<compile_context>
chip_gen: v5e
topology: v5e:2x2
jax: 0.10.0
libtpu: 0.0.40
codegen_flags: <defaults>
</compile_context>

<pallas_src>
import functools

import jax
import jax.numpy as jnp
from jax.experimental import pallas as pl
from jax.experimental.pallas import tpu as pltpu


def _round_up(v, m):
    return -(-v // m) * m


def _ce_partial_kernel(x_ref, y_ref, out_ref, *, tile_n, n_valid):
    # x_ref:  [TILE_N, C]   logits (native dtype, upcast here)
    # y_ref:  [TILE_N, 1]   int32 class indices
    # out_ref:[1, 128]      f32 per-block partial sum (lane-dense output)
    i = pl.program_id(0)

    x = x_ref[...].astype(jnp.float32)            # [TILE_N, C]
    y = y_ref[...]                                # [TILE_N, 1] int32

    # Numerically stable shifted logits; target gather fused into the same
    # (x - m) pass.
    m = jnp.max(x, axis=-1, keepdims=True)                                 # [TILE_N, 1]
    xs = x - m                                                             # [TILE_N, C]
    col = jax.lax.broadcasted_iota(jnp.int32, xs.shape, dimension=1)       # [TILE_N, C]
    tgt_s = jnp.sum(jnp.where(col == y, xs, 0.0), axis=-1, keepdims=True)  # x[i,y_i]-m
    lse_s = jnp.log(jnp.sum(jnp.exp(xs), axis=-1, keepdims=True))          # lse - m
    loss_rows = lse_s - tgt_s                                              # [TILE_N, 1]

    # Mask rows past N.  The partial last block reads unspecified data there
    # (x is NOT padded); jnp.where selects 0.0 per-lane so garbage/NaN never
    # propagates into the partial sum.  Keep this mask ordering intact.
    row = jax.lax.broadcasted_iota(jnp.int32, (tile_n, 1), 0) + i * tile_n
    loss_rows = jnp.where(row < n_valid, loss_rows, 0.0)

    out_ref[...] = jnp.broadcast_to(jnp.sum(loss_rows), out_ref.shape)


def _ce_reference(x, y):
    """Plain fused-XLA cross entropy (mean). Used as the small-problem path."""
    xf = x.astype(jnp.float32)
    lse = jax.nn.logsumexp(xf, axis=-1)
    tgt = jnp.take_along_axis(xf, y.astype(jnp.int32)[:, None], axis=-1)[:, 0]
    return jnp.sum(lse - tgt) / jnp.float32(x.shape[0])


def _vmem_capacity_bytes():
    try:
        info = pltpu.get_tpu_info()
        cap = getattr(info, "vmem_capacity_bytes", None)
        if cap:
            return int(cap)
    except Exception:
        pass
    return 64 * 1024 * 1024  # conservative default (v7x per-core VMEM)


def myloss_forward(x, y, *, use_pallas=None):
    """CrossEntropyLoss(x, y) with mean reduction.

    x: [N, C] logits (f32 or bf16), y: [N] integer class indices.
    use_pallas: None = auto (fall back to fused XLA for tiny problems),
                True/False = force the path.
    """
    N, C = x.shape
    in_itemsize = jnp.dtype(x.dtype).itemsize

    # Small-problem fallback: narrow C wastes vreg lanes and launch/per-step
    # overhead dominates; XLA's fused elementwise+reduce wins there.
    if use_pallas is None:
        use_pallas = (C >= 128) and (N * C * in_itemsize >= 256 * 1024)
    if not use_pallas:
        return _ce_reference(x, y)

    # ---- Generation-aware tile sizing -------------------------------------
    vmem_cap = _vmem_capacity_bytes()                       # 64 MiB v7x, 128 MiB v5e/v6e
    vmem_limit = max(32 * 1024 * 1024,
                     min(int(vmem_cap * 0.7), 88 * 1024 * 1024))
    tile_budget = int(vmem_limit * 0.8)

    # Per-row VMEM footprint: 2x double-buffered native-dtype input row,
    # ~4 full-width 32-bit temporaries (f32 upcast, shifted logits, exp,
    # iota/where) plus a fixed allowance for the label block / per-row scalars.
    per_row = 2 * C * in_itemsize + 4 * C * 4 + 4096

    # Sub-32-bit dtypes pack rows along sublanes: align bf16 tiles to 16 rows
    # (int8/fp8 to 32); f32 needs only 8.
    row_align = max(8, 32 // in_itemsize)

    tile_n = max(row_align, (tile_budget // per_row) // row_align * row_align)
    tile_n = min(tile_n, _round_up(N, row_align))
    if N > 2 * row_align:
        # Keep >= 2 row blocks so the "parallel" axis can shard across both
        # TensorCores on v7x (negligible cost on v5e/v6e).
        tile_n = min(tile_n, _round_up(_round_up(N, 2) // 2, row_align))

    grid_n = -(-N // tile_n)
    n_pad = grid_n * tile_n

    # x is NOT padded; only the tiny label vector is padded to a whole number
    # of row blocks.
    y2 = y.astype(jnp.int32)
    if n_pad != N:
        y2 = jnp.pad(y2, ((0, n_pad - N),))
    y2 = y2.reshape(n_pad, 1)

    kernel = functools.partial(_ce_partial_kernel, tile_n=tile_n, n_valid=N)

    partials = pl.pallas_call(
        kernel,
        out_shape=jax.ShapeDtypeStruct((grid_n, 128), jnp.float32),
        grid=(grid_n,),
        in_specs=[
            pl.BlockSpec((tile_n, C), lambda i: (i, 0)),   # logits row-block
            pl.BlockSpec((tile_n, 1), lambda i: (i, 0)),   # labels row-block
        ],
        out_specs=pl.BlockSpec((1, 128), lambda i: (i, 0)),
        compiler_params=pltpu.CompilerParams(
            dimension_semantics=("parallel",),
            vmem_limit_bytes=vmem_limit,
        ),
        cost_estimate=pl.CostEstimate(
            flops=5 * N * C,
            transcendentals=N * C + N,           # exp per element + log per row
            bytes_accessed=N * C * in_itemsize + n_pad * 4 + grid_n * 128 * 4,
        ),
    )(x, y2)

    # Tiny wrapper-side reduction of the per-block partial sums + mean.
    return jnp.sum(partials[:, 0]) / jnp.float32(N)


if __name__ == "__main__":
    key = jax.random.PRNGKey(0)
    k1, k2, k3, k4, key = jax.random.split(key, 5)

    # (1) Small shapes consistent with CrossEntropyLoss (batch=8, classes=32),
    #     forced through the Pallas kernel so the kernel itself runs.
    N, C = 8, 32
    x = jax.random.normal(k1, (N, C), dtype=jnp.float32)
    y = jax.random.randint(k2, (N,), 0, C, dtype=jnp.int32)
    loss = myloss_forward(x, y, use_pallas=True)
    jax.block_until_ready(loss)
    ref = jnp.mean(jax.nn.logsumexp(x, axis=-1) - x[jnp.arange(N), y])
    assert jnp.allclose(loss, ref, atol=1e-5, rtol=1e-5), (loss, ref)

    # (2) Same small shape via the auto path (small-problem fused-XLA fallback).
    loss_auto = myloss_forward(x, y)
    jax.block_until_ready(loss_auto)
    assert jnp.allclose(loss_auto, ref, atol=1e-5, rtol=1e-5), (loss_auto, ref)

    # (3) Ragged N with bf16 logits: native-dtype path, unpadded x, partial
    #     last block handled by the in-kernel row mask.
    N2, C2 = 13, 40
    x2 = jax.random.normal(k3, (N2, C2), dtype=jnp.float32).astype(jnp.bfloat16)
    y2 = jax.random.randint(k4, (N2,), 0, C2, dtype=jnp.int32)
    loss2 = myloss_forward(x2, y2, use_pallas=True)
    jax.block_until_ready(loss2)
    x2f = x2.astype(jnp.float32)
    ref2 = jnp.mean(jax.nn.logsumexp(x2f, axis=-1) - x2f[jnp.arange(N2), y2])
    assert jnp.allclose(loss2, ref2, atol=2e-3, rtol=2e-3), (loss2, ref2)

    # (4) Moderate shape that takes the Pallas path automatically and is split
    #     into >= 2 row blocks (megacore sharding on v7x).
    k5, k6 = jax.random.split(key)
    N3, C3 = 384, 512
    x3 = jax.random.normal(k5, (N3, C3), dtype=jnp.float32)
    y3 = jax.random.randint(k6, (N3,), 0, C3, dtype=jnp.int32)
    loss3 = myloss_forward(x3, y3)
    jax.block_until_ready(loss3)
    ref3 = jnp.mean(jax.nn.logsumexp(x3, axis=-1) - x3[jnp.arange(N3), y3])
    assert jnp.allclose(loss3, ref3, atol=1e-4, rtol=1e-5), (loss3, ref3)

    print("KERNEL_OK")
</pallas_src>

<mosaic_0001>
module attributes {stable_mosaic.version = 11 : i64} {
  func.func @_ce_partial_kernel(%arg0: i32, %arg1: memref<8x32xf32, #tpu.memory_space<vmem>>, %arg2: memref<8x1xi32, #tpu.memory_space<vmem>>, %arg3: memref<1x128xf32, #tpu.memory_space<vmem>>) attributes {dimension_semantics = [#tpu.dimension_semantics<parallel>], iteration_bounds = array<i64: 1>, scalar_prefetch = 0 : i64, scratch_operands = 0 : i64, tpu.core_type = #tpu.core_type<tc>, window_params = [{transform_indices = @transform_0, window_bounds = array<i64: 8, 32>}, {transform_indices = @transform_1, window_bounds = array<i64: 8, 1>}, {transform_indices = @transform_2, window_bounds = array<i64: 1, 128>}]} {
    %c0 = arith.constant 0 : index
    %c0_0 = arith.constant 0 : index
    %0 = vector.load %arg1[%c0, %c0_0] : memref<8x32xf32, #tpu.memory_space<vmem>>, vector<8x32xf32>
    %c0_1 = arith.constant 0 : index
    %c0_2 = arith.constant 0 : index
    %1 = vector.load %arg2[%c0_1, %c0_2] : memref<8x1xi32, #tpu.memory_space<vmem>>, vector<8x1xi32>
    %cst = arith.constant dense<0xFF800000> : vector<8xf32>
    %2 = vector.multi_reduction <maximumf>, %0, %cst [1] : vector<8x32xf32> to vector<8xf32>
    %3 = vector.shape_cast %2 : vector<8xf32> to vector<8x1xf32>
    %4 = vector.broadcast %3 : vector<8x1xf32> to vector<8x32xf32>
    %5 = arith.subf %0, %4 : vector<8x32xf32>
    %6 = tpu.iota {dimensions = array<i32: 1>} : vector<8x32xi32>
    %7 = vector.broadcast %1 : vector<8x1xi32> to vector<8x32xi32>
    %8 = arith.cmpi eq, %6, %7 : vector<8x32xi32>
    %cst_3 = arith.constant 0.000000e+00 : f32
    %9 = vector.broadcast %cst_3 : f32 to vector<8x32xf32>
    %10 = arith.select %8, %5, %9 : vector<8x32xi1>, vector<8x32xf32>
    %cst_4 = arith.constant dense<0.000000e+00> : vector<8xf32>
    %11 = vector.multi_reduction <add>, %10, %cst_4 [1] : vector<8x32xf32> to vector<8xf32>
    %12 = vector.shape_cast %11 : vector<8xf32> to vector<8x1xf32>
    %13 = math.exp %5 : vector<8x32xf32>
    %cst_5 = arith.constant dense<0.000000e+00> : vector<8xf32>
    %14 = vector.multi_reduction <add>, %13, %cst_5 [1] : vector<8x32xf32> to vector<8xf32>
    %15 = vector.shape_cast %14 : vector<8xf32> to vector<8x1xf32>
    %16 = math.log %15 : vector<8x1xf32>
    %17 = arith.subf %16, %12 : vector<8x1xf32>
    %18 = tpu.iota {dimensions = array<i32: 0>} : vector<8x1xi32>
    %c8_i32 = arith.constant 8 : i32
    %19 = arith.muli %arg0, %c8_i32 : i32
    %20 = vector.broadcast %19 : i32 to vector<8x1xi32>
    %21 = arith.addi %18, %20 : vector<8x1xi32>
    %c8_i32_6 = arith.constant 8 : i32
    %22 = vector.broadcast %c8_i32_6 : i32 to vector<8x1xi32>
    %23 = arith.cmpi slt, %21, %22 : vector<8x1xi32>
    %cst_7 = arith.constant 0.000000e+00 : f32
    %24 = vector.broadcast %cst_7 : f32 to vector<8x1xf32>
    %25 = arith.select %23, %17, %24 : vector<8x1xi1>, vector<8x1xf32>
    %26 = vector.shape_cast %25 : vector<8x1xf32> to vector<1x8x1xf32>
    %cst_8 = arith.constant dense<0.000000e+00> : vector<1xf32>
    %27 = vector.multi_reduction <add>, %26, %cst_8 [1, 2] : vector<1x8x1xf32> to vector<1xf32>
    %28 = vector.shape_cast %27 : vector<1xf32> to vector<1x1x1xf32>
    %29 = vector.extract %28[0, 0, 0] : f32 from vector<1x1x1xf32>
    %30 = vector.broadcast %29 : f32 to vector<1x128xf32>
    %c0_9 = arith.constant 0 : index
    %c0_10 = arith.constant 0 : index
    %31 = vector.load %arg3[%c0_9, %c0_10] : memref<1x128xf32, #tpu.memory_space<vmem>>, vector<1x128xf32>
    tpu.vector_store %arg3[%c0_9, %c0_10], %30 {strides = array<i32>} : memref<1x128xf32, #tpu.memory_space<vmem>>, vector<1x128xf32>,
    return
  }
  func.func @transform_0(%arg0: i32) -> (i32, i32) {
    %c0_i32 = arith.constant 0 : i32
    %c0_i32_0 = arith.constant 0 : i32
    return %arg0, %c0_i32 : i32, i32
  }
  func.func @transform_1(%arg0: i32) -> (i32, i32) {
    %c0_i32 = arith.constant 0 : i32
    %c0_i32_0 = arith.constant 0 : i32
    return %arg0, %c0_i32 : i32, i32
  }
  func.func @transform_2(%arg0: i32) -> (i32, i32) {
    %c0_i32 = arith.constant 0 : i32
    %c0_i32_0 = arith.constant 0 : i32
    return %arg0, %c0_i32 : i32, i32
  }
}

</mosaic_0001>

<llo_original>
// kernel: tpu_custom_call.1
$region0: #{tpu_custom_call.1}
  #allocation0 [shape = 'u32[]', space=smem, size = 0x4, offset = 0x4, fixed_abs, tag = 'smem constant byte address 0x4 - core index']
  #allocation1 [shape = 'u32[72,128]{1,0:T(1,128)}', space=vmem, size = 0x9000, scoped, tag = 'internal scratch']
  %s0 = inlined_call_operand.vmem [shape: f32[8,32], index: 0, kind: input, shape index: {}]
  %s1 = inlined_call_operand.vmem [shape: s32[8,1], index: 1, kind: input, shape index: {}]
  %s2 = inlined_call_operand.hbm [shape: f32[1,128], index: 2, kind: output, shape index: {}]
  %s3 = sld [smem:[#allocation0]]
  $region18: #{tpu_custom_call.1} parent=0
    _
  %s5 = ssub.s32 1, %s3
  %s6 = scalar_select 0, %s5, %s3
  $region1: #{tpu_custom_call.1} parent=0
    #allocation2 [shape = 'u8[512]{0}', space=vmem, size = 0x400, scoped, tag = 'output window, operand 0, single buffered']
    #allocation3 [shape = 's32[1]{0}', space=sflag, size = 0x4, scoped, tag = 'scoped memory for tpu_custom_call.1']
    %7 = vsyncpa [#allocation3], 0
    // Predicated region
    $region2: #{tpu_custom_call.1} parent=1 // pred_check
      _
    $region3: #{tpu_custom_call.1} parent=1 // pred_check_branch
      %9 = sbr.rel (0) target = $region5
    $region4: #{tpu_custom_call.1} parent=1 // pred_region
      _
    $region5: #{tpu_custom_call.1} parent=1 // pred_fallthru
      _
    // Predicated region
    $region6: #{tpu_custom_call.1} parent=1 // pred_check
      _
    $region7: #{tpu_custom_call.1} parent=1 // pred_check_branch
      %11 = sbr.rel (0) target = $region9
    $region8: #{tpu_custom_call.1} parent=1 // pred_region
      _
    $region9: #{tpu_custom_call.1} parent=1 // pred_fallthru
      _
    %v12 = vld [vmem:[%s0] sm:$0xff]
    %v13 = vld [vmem:[%s1] sm:$0xff]
    %vm14 = vcmask 261120
    %v15 = vsel %vm14, %v12, -inf
    %16 = vmax.xlane.f32.xlu0 %v15
    %v17 = vpop.xlane.xlu0 %16
    %v18 = vsub.f32 %v12, %v17
    %v19 = vlaneseq
    %v20 = vand.u32 %v19, 127
    %21 = vset.pattern.permute.xlu0 0
    %22 = vperm.xlu0 %21, %v13
    %v23 = vpop.permute.xlu0 %22
    %vm24 = vcmp.eq.s32.totalorder %v20, %v23
    %v25 = vsel %vm24, %v18, 0.0
    %v26 = vsel %vm14, %v25, 0.0
    %27 = vadd.xlane.f32.xlu0 %v26
    %v28 = vpop.xlane.xlu0 %27
    %v29 = vmul.f32 %v18, 1.442695
    %v30 = vpow.pop %v29
    %v31 = vsel %vm14, %v30, 0.0
    %32 = vadd.xlane.f32.xlu0 %v31
    %v33 = vpop.xlane.xlu0 %32
    %v34 = vlog2.pop %v33
    %v35 = vmul.f32 %v34, 0.6931472
    %v36 = vsub.f32 %v35, %v28
    %v37 = vlaneseq
    %v38 = vshrl.u32 %v37, 7
    %s39 = smul.u32 0, 8
    %v40 = vstv %s39
    %v41 = vadd.s32 %v38, %v40
    %vm42 = vcmp.lt.s32.totalorder %v41, 8
    %v43 = vsel %vm42, %v36, 0.0
    %vm44 = vcmask 7168
    %v45 = vsel %vm44, %v43, 0.0
    %46 = vadd.xlane.f32.xlu0 %v45
    %v47 = vpop.xlane.xlu0 %46
    %v48 = vrot.slane %v47, 4
    %v49 = vadd.f32 %v47, %v48
    %v50 = vrot.slane %v49, 2
    %v51 = vadd.f32 %v49, %v50
    %v52 = vrot.slane %v51, 1
    %v53 = vadd.f32 %v51, %v52
    %s54 = vtos %v53
    %v55 = vstv %s54
    %56 = vst [vmem:[#allocation2] sm:$0x1] %v55
    // Predicated region
    $region10: #{tpu_custom_call.1} parent=1 // pred_check
      _
    $region11: #{tpu_custom_call.1} parent=1 // pred_check_branch
      %58 = sbr.rel (0) target = $region13
    $region12: #{tpu_custom_call.1} parent=1 // pred_region
      %60 = vsyncadd [#allocation3], 0
      %s62 = sshll.u32 [#allocation2], 4
      %s63 = int_to_ptr.vmem [resolvable:$true] %s62
      %s64 = sshll.u32 %s2, 4
      %s65 = int_to_ptr.hbm [resolvable:$true] %s64
      %67 = dma.vmem_to_hbm [thread:$0]  %s63, 16, %s65, [#allocation3]
    $region13: #{tpu_custom_call.1} parent=1 // pred_fallthru
      _
    // Predicated region
    $region14: #{tpu_custom_call.1} parent=1 // pred_check
      _
    $region15: #{tpu_custom_call.1} parent=1 // pred_check_branch
      %69 = sbr.rel (0) target = $region17
    $region16: #{tpu_custom_call.1} parent=1 // pred_region
      %71 = dma.done [#allocation3], 16
    $region17: #{tpu_custom_call.1} parent=1 // pred_fallthru
      _
    %72 = vsyncpa [#allocation3], 1

</llo_original>
